<compile_context>
chip_gen: v5e
topology: v5e:2x2
jax: 0.10.0
libtpu: 0.0.40
codegen_flags: <defaults>
</compile_context>

<pallas_src>
import math
import functools

import jax
import jax.numpy as jnp
from jax import lax
from jax.experimental import pallas as pl
from jax.experimental.pallas import tpu as pltpu


def _round_up(x, mult):
    return ((x + mult - 1) // mult) * mult


def _choose_tile_n(tn_request, c_pad, n_feat, batch, bytes_mxu,
                   vmem_budget=20 * 1024 * 1024):
    """Pick a lane-dense class-tile width that fits the VMEM budget on all gens."""
    tn = min(_round_up(tn_request, 128), c_pad)

    def usage(t):
        return (2 * n_feat * t * bytes_mxu       # double-buffered weight tile
                + 2 * batch * t * 4              # double-buffered output tile
                + 2 * t * 4                      # inv ||w|| tile
                + batch * n_feat * bytes_mxu     # resident normalized input
                + batch * 128 * 4)               # lane-padded targets

    while tn > 128 and usage(tn) > vmem_budget:
        tn -= 128
    return tn


def _subcenter_arcface_kernel(x_ref, w_ref, winv_ref, tgt_ref, out_ref, *,
                              s, m, eps, tile_n):
    ci = pl.program_id(0)          # class-tile index (parallel axis)
    ki = pl.program_id(1)          # sub-center index (sequential reduction)

    @pl.when(ki == 0)
    def _():
        out_ref[...] = jnp.full(out_ref.shape, -jnp.inf, dtype=out_ref.dtype)

    # cos_k = (xn @ w_k) * (1 / ||w_k||)  -- MXU matmul with f32 accumulation,
    # post-scaled by the precomputed inverse column norms (B*TN mults).
    cos_k = jnp.dot(x_ref[...], w_ref[0],
                    preferred_element_type=jnp.float32) * winv_ref[0]
    out_ref[...] = jnp.maximum(out_ref[...], cos_k)

    # ArcFace margin epilogue on the last sub-center iteration, in-place.
    @pl.when(ki == pl.num_programs(1) - 1)
    def _():
        c = jnp.clip(out_ref[...], -1.0 + eps, 1.0 - eps)
        sin_theta = jnp.sqrt(jnp.maximum(1.0 - c * c, 0.0))
        keep = c >= math.cos(math.pi - m)                  # theta <= pi - m
        col = lax.broadcasted_iota(jnp.int32, c.shape, 1) + ci * tile_n
        one_hot = col == tgt_ref[...]                      # (B,1) -> (B,TN)
        selected = jnp.logical_and(one_hot, keep)
        margin_cos = c * math.cos(m) - sin_theta * math.sin(m)   # cos(theta+m)
        out_ref[...] = jnp.where(selected, margin_cos, c) * s


def subcenter_arcface(x, weight, target, *, s=32.0, m=0.5, eps=1e-6,
                      mxu_dtype=jnp.bfloat16, tile_n=1024):
    """x: (B, F); weight: (k, F, C); target: (B,) int -> (B, C) f32 logits."""
    B, F = x.shape
    k, F2, C = weight.shape
    assert F == F2, "feature dims must match"

    # --- hoisted normalizations (done once, outside the k x C_tiles loop) ---
    xf = x.astype(jnp.float32)
    x_norm = jnp.sqrt(jnp.sum(xf * xf, axis=1, keepdims=True))
    xn = (xf / jnp.maximum(x_norm, 1e-12)).astype(mxu_dtype)        # (B, F)

    wf = weight.astype(jnp.float32)
    w_norm = jnp.sqrt(jnp.sum(wf * wf, axis=1))                     # (k, C)
    inv_wnorm = (1.0 / jnp.maximum(w_norm, 1e-12)).reshape(k, 1, C)  # (k,1,C) f32
    w_c = weight.astype(mxu_dtype)                                  # raw weights to MXU

    # --- lane-dense class tiling + padding (C to a multiple of tile) ---
    bytes_mxu = jnp.dtype(mxu_dtype).itemsize
    c_pad0 = _round_up(C, 128)
    tn = _choose_tile_n(tile_n, c_pad0, F, B, bytes_mxu)
    c_pad = _round_up(C, tn)
    if c_pad != C:
        pad = c_pad - C
        w_c = jnp.pad(w_c, ((0, 0), (0, 0), (0, pad)))              # zero columns
        inv_wnorm = jnp.pad(inv_wnorm, ((0, 0), (0, 0), (0, pad)))  # -> cos = 0 there
    n_ct = c_pad // tn

    tgt = target.astype(jnp.int32).reshape(B, 1)

    # TODO(synk): F is left unpadded (full-dim block is legal); pad F/B to
    # 128/8 multiples at the call site for peak MXU utilization on big shapes.
    kernel = functools.partial(_subcenter_arcface_kernel,
                               s=float(s), m=float(m), eps=float(eps), tile_n=tn)
    out = pl.pallas_call(
        kernel,
        out_shape=jax.ShapeDtypeStruct((B, c_pad), jnp.float32),
        grid_spec=pltpu.PrefetchScalarGridSpec(
            num_scalar_prefetch=0,
            grid=(n_ct, k),                                     # k innermost (reduction)
            in_specs=[
                pl.BlockSpec((B, F), lambda ci, ki: (0, 0)),        # normalized x (resident)
                pl.BlockSpec((1, F, tn), lambda ci, ki: (ki, 0, ci)),  # weight tile
                pl.BlockSpec((1, 1, tn), lambda ci, ki: (ki, 0, ci)),  # 1/||w|| tile
                pl.BlockSpec((B, 1), lambda ci, ki: (0, 0)),        # targets (fetched once)
            ],
            out_specs=pl.BlockSpec((B, tn), lambda ci, ki: (0, ci)),  # max-accumulator
        ),
        compiler_params=pltpu.CompilerParams(
            dimension_semantics=("parallel", "arbitrary"),
            vmem_limit_bytes=32 * 1024 * 1024),
    )(xn, w_c, inv_wnorm, tgt)
    return out[:, :C]


def subcenter_arcface_ref(x, weight, target, *, s=32.0, m=0.5, eps=1e-6):
    """Plain-JAX reference mirroring the PyTorch code exactly (f32)."""
    xn = x / jnp.maximum(jnp.linalg.norm(x, axis=1, keepdims=True), 1e-12)
    wn = weight / jnp.maximum(jnp.linalg.norm(weight, axis=1, keepdims=True), 1e-12)
    cos_theta = jnp.max(jnp.einsum('bf,kfc->kbc', xn, wn), axis=0)
    theta = jnp.arccos(jnp.clip(cos_theta, -1.0 + eps, 1.0 - eps))
    one_hot = jax.nn.one_hot(target, cos_theta.shape[1], dtype=cos_theta.dtype)
    threshold = math.pi - m
    selected = jnp.where(theta > threshold, jnp.zeros_like(one_hot), one_hot)
    logits = jnp.cos(jnp.where(selected.astype(bool), theta + m, theta)) * s
    return logits


if __name__ == "__main__":
    # Small shapes consistent with the module: (batch, in_features) -> (batch, out_features)
    B, IN_F, OUT_F, K = 8, 32, 16, 3
    S, M, EPS = 32.0, 0.5, 1e-6

    key = jax.random.PRNGKey(0)
    kx, kw, kt = jax.random.split(key, 3)

    x = jax.random.normal(kx, (B, IN_F), dtype=jnp.float32)

    # Deterministic xavier_uniform_-style init for weight (k, in_features, out_features).
    fan_in = IN_F * OUT_F
    fan_out = K * OUT_F
    bound = math.sqrt(6.0 / (fan_in + fan_out))
    weight = jax.random.uniform(kw, (K, IN_F, OUT_F), jnp.float32,
                                minval=-bound, maxval=bound)

    target = jax.random.randint(kt, (B,), 0, OUT_F, dtype=jnp.int32)

    ref = subcenter_arcface_ref(x, weight, target, s=S, m=M, eps=EPS)

    # Exact-precision path (f32 MXU operands): tight check vs the PyTorch-equivalent ref.
    out_f32 = jax.block_until_ready(
        subcenter_arcface(x, weight, target, s=S, m=M, eps=EPS,
                          mxu_dtype=jnp.float32))
    assert out_f32.shape == (B, OUT_F)
    assert jnp.allclose(out_f32, ref, atol=1e-3, rtol=1e-3), (
        f"f32 mismatch: max abs diff {jnp.max(jnp.abs(out_f32 - ref))}")

    # Default fast path (bf16 MXU operands, f32 accumulation): loose tolerance
    # (bf16 mantissa ~8 bits, logits scaled by s=32).
    out_bf16 = jax.block_until_ready(
        subcenter_arcface(x, weight, target, s=S, m=M, eps=EPS))
    assert out_bf16.shape == (B, OUT_F)
    assert jnp.allclose(out_bf16, ref, atol=3e-1), (
        f"bf16 mismatch: max abs diff {jnp.max(jnp.abs(out_bf16 - ref))}")

    print("KERNEL_OK")
</pallas_src>

<mosaic_0001>
module attributes {stable_mosaic.version = 11 : i64} {
  func.func @_subcenter_arcface_kernel(%arg0: i32, %arg1: i32, %arg2: memref<8x32xf32, #tpu.memory_space<vmem>>, %arg3: memref<1x32x128xf32, #tpu.memory_space<vmem>>, %arg4: memref<1x1x128xf32, #tpu.memory_space<vmem>>, %arg5: memref<8x1xi32, #tpu.memory_space<vmem>>, %arg6: memref<8x128xf32, #tpu.memory_space<vmem>>) attributes {dimension_semantics = [#tpu.dimension_semantics<parallel>, #tpu.dimension_semantics<arbitrary>], iteration_bounds = array<i64: 1, 3>, scalar_prefetch = 0 : i64, scratch_operands = 0 : i64, tpu.core_type = #tpu.core_type<tc>, window_params = [{pipeline_mode = #tpu.pipeline_mode<synchronous>, transform_indices = @transform_0, window_bounds = array<i64: 8, 32>}, {transform_indices = @transform_1, window_bounds = array<i64: 1, 32, 128>}, {transform_indices = @transform_2, window_bounds = array<i64: 1, 1, 128>}, {pipeline_mode = #tpu.pipeline_mode<synchronous>, transform_indices = @transform_3, window_bounds = array<i64: 8, 1>}, {transform_indices = @transform_4, window_bounds = array<i64: 8, 128>}]} {
    %c0_i32 = arith.constant 0 : i32
    %0 = arith.cmpi eq, %arg1, %c0_i32 : i32
    %1 = arith.extui %0 : i1 to i32
    %c0_i32_0 = arith.constant 0 : i32
    %2 = arith.cmpi ne, %1, %c0_i32_0 : i32
    scf.if %2 {
      %cst_13 = arith.constant 0xFF800000 : f32
      %17 = vector.broadcast %cst_13 : f32 to vector<8x128xf32>
      %c0_14 = arith.constant 0 : index
      %c0_15 = arith.constant 0 : index
      %18 = vector.load %arg6[%c0_14, %c0_15] : memref<8x128xf32, #tpu.memory_space<vmem>>, vector<8x128xf32>
      tpu.vector_store %arg6[%c0_14, %c0_15], %17 {strides = array<i32>} : memref<8x128xf32, #tpu.memory_space<vmem>>, vector<8x128xf32>,
    } else {
    }
    %c0 = arith.constant 0 : index
    %c0_1 = arith.constant 0 : index
    %3 = vector.load %arg2[%c0, %c0_1] : memref<8x32xf32, #tpu.memory_space<vmem>>, vector<8x32xf32>
    %c0_2 = arith.constant 0 : index
    %c0_3 = arith.constant 0 : index
    %c0_4 = arith.constant 0 : index
    %4 = vector.load %arg3[%c0_2, %c0_3, %c0_4] : memref<1x32x128xf32, #tpu.memory_space<vmem>>, vector<1x32x128xf32>
    %5 = vector.shape_cast %4 : vector<1x32x128xf32> to vector<32x128xf32>
    %cst = arith.constant dense<0.000000e+00> : vector<8x128xf32>
    %6 = tpu.matmul %3, %5, %cst {dimension_numbers = #tpu.dot_dimension_numbers<[1], [0], [0], [1], [0, 0, 1, 1], [], []>} : vector<8x32xf32>, vector<32x128xf32>, vector<8x128xf32> -> vector<8x128xf32>
    %c0_5 = arith.constant 0 : index
    %c0_6 = arith.constant 0 : index
    %c0_7 = arith.constant 0 : index
    %7 = vector.load %arg4[%c0_5, %c0_6, %c0_7] : memref<1x1x128xf32, #tpu.memory_space<vmem>>, vector<1x1x128xf32>
    %8 = vector.shape_cast %7 : vector<1x1x128xf32> to vector<1x128xf32>
    %9 = vector.broadcast %8 : vector<1x128xf32> to vector<8x128xf32>
    %10 = arith.mulf %6, %9 : vector<8x128xf32>
    %c0_8 = arith.constant 0 : index
    %c0_9 = arith.constant 0 : index
    %11 = vector.load %arg6[%c0_8, %c0_9] : memref<8x128xf32, #tpu.memory_space<vmem>>, vector<8x128xf32>
    %12 = arith.maximumf %11, %10 : vector<8x128xf32>
    %c0_10 = arith.constant 0 : index
    %c0_11 = arith.constant 0 : index
    %13 = vector.load %arg6[%c0_10, %c0_11] : memref<8x128xf32, #tpu.memory_space<vmem>>, vector<8x128xf32>
    tpu.vector_store %arg6[%c0_10, %c0_11], %12 {strides = array<i32>} : memref<8x128xf32, #tpu.memory_space<vmem>>, vector<8x128xf32>,
    %c2_i32 = arith.constant 2 : i32
    %14 = arith.cmpi eq, %arg1, %c2_i32 : i32
    %15 = arith.extui %14 : i1 to i32
    %c0_i32_12 = arith.constant 0 : i32
    %16 = arith.cmpi ne, %15, %c0_i32_12 : i32
    scf.if %16 {
      %c0_13 = arith.constant 0 : index
      %c0_14 = arith.constant 0 : index
      %17 = vector.load %arg6[%c0_13, %c0_14] : memref<8x128xf32, #tpu.memory_space<vmem>>, vector<8x128xf32>
      %cst_15 = arith.constant -0.999998986 : f32
      %cst_16 = arith.constant 0.999998986 : f32
      %18 = vector.broadcast %cst_15 : f32 to vector<8x128xf32>
      %19 = arith.maximumf %18, %17 : vector<8x128xf32>
      %20 = vector.broadcast %cst_16 : f32 to vector<8x128xf32>
      %21 = arith.minimumf %20, %19 : vector<8x128xf32>
      %22 = arith.mulf %21, %21 : vector<8x128xf32>
      %cst_17 = arith.constant 1.000000e+00 : f32
      %23 = vector.broadcast %cst_17 : f32 to vector<8x128xf32>
      %24 = arith.subf %23, %22 : vector<8x128xf32>
      %cst_18 = arith.constant 0.000000e+00 : f32
      %25 = vector.broadcast %cst_18 : f32 to vector<8x128xf32>
      %26 = arith.maximumf %24, %25 : vector<8x128xf32>
      %27 = math.sqrt %26 : vector<8x128xf32>
      %cst_19 = arith.constant -0.87758255 : f32
      %28 = vector.broadcast %cst_19 : f32 to vector<8x128xf32>
      %29 = arith.cmpf oge, %21, %28 : vector<8x128xf32>
      %30 = tpu.iota {dimensions = array<i32: 1>} : vector<8x128xi32>
      %c128_i32 = arith.constant 128 : i32
      %31 = arith.muli %arg0, %c128_i32 : i32
      %32 = vector.broadcast %31 : i32 to vector<8x128xi32>
      %33 = arith.addi %30, %32 : vector<8x128xi32>
      %c0_20 = arith.constant 0 : index
      %c0_21 = arith.constant 0 : index
      %34 = vector.load %arg5[%c0_20, %c0_21] : memref<8x1xi32, #tpu.memory_space<vmem>>, vector<8x1xi32>
      %35 = vector.broadcast %34 : vector<8x1xi32> to vector<8x128xi32>
      %36 = arith.cmpi eq, %33, %35 : vector<8x128xi32>
      %37 = arith.andi %36, %29 : vector<8x128xi1>
      %cst_22 = arith.constant 0.87758255 : f32
      %38 = vector.broadcast %cst_22 : f32 to vector<8x128xf32>
      %39 = arith.mulf %21, %38 : vector<8x128xf32>
      %cst_23 = arith.constant 0.47942555 : f32
      %40 = vector.broadcast %cst_23 : f32 to vector<8x128xf32>
      %41 = arith.mulf %27, %40 : vector<8x128xf32>
      %42 = arith.subf %39, %41 : vector<8x128xf32>
      %43 = arith.select %37, %42, %21 : vector<8x128xi1>, vector<8x128xf32>
      %cst_24 = arith.constant 3.200000e+01 : f32
      %44 = vector.broadcast %cst_24 : f32 to vector<8x128xf32>
      %45 = arith.mulf %43, %44 : vector<8x128xf32>
      %c0_25 = arith.constant 0 : index
      %c0_26 = arith.constant 0 : index
      %46 = vector.load %arg6[%c0_25, %c0_26] : memref<8x128xf32, #tpu.memory_space<vmem>>, vector<8x128xf32>
      tpu.vector_store %arg6[%c0_25, %c0_26], %45 {strides = array<i32>} : memref<8x128xf32, #tpu.memory_space<vmem>>, vector<8x128xf32>,
    } else {
    }
    return
  }
  func.func @transform_0(%arg0: i32, %arg1: i32) -> (i32, i32) {
    %c0_i32 = arith.constant 0 : i32
    %c0_i32_0 = arith.constant 0 : i32
    %c0_i32_1 = arith.constant 0 : i32
    return %c0_i32, %c0_i32_0 : i32, i32
  }
  func.func @transform_1(%arg0: i32, %arg1: i32) -> (i32, i32, i32) {
    %c0_i32 = arith.constant 0 : i32
    %c0_i32_0 = arith.constant 0 : i32
    return %arg1, %c0_i32, %arg0 : i32, i32, i32
  }
  func.func @transform_2(%arg0: i32, %arg1: i32) -> (i32, i32, i32) {
    %c0_i32 = arith.constant 0 : i32
    %c0_i32_0 = arith.constant 0 : i32
    return %arg1, %c0_i32, %arg0 : i32, i32, i32
  }
  func.func @transform_3(%arg0: i32, %arg1: i32) -> (i32, i32) {
    %c0_i32 = arith.constant 0 : i32
    %c0_i32_0 = arith.constant 0 : i32
    %c0_i32_1 = arith.constant 0 : i32
    return %c0_i32, %c0_i32_0 : i32, i32
  }
  func.func @transform_4(%arg0: i32, %arg1: i32) -> (i32, i32) {
    %c0_i32 = arith.constant 0 : i32
    %c0_i32_0 = arith.constant 0 : i32
    return %c0_i32, %arg0 : i32, i32
  }
}

</mosaic_0001>

<llo_original>
// kernel: tpu_custom_call.1
$region0: #{tpu_custom_call.1}
  #allocation0 [shape = 'u32[]', space=smem, size = 0x4, offset = 0x4, fixed_abs, tag = 'smem constant byte address 0x4 - core index']
  #allocation1 [shape = 'u32[72,128]{1,0:T(1,128)}', space=vmem, size = 0x9000, scoped, tag = 'internal scratch']
  %s0 = inlined_call_operand.vmem [shape: f32[8,32], index: 0, kind: input, shape index: {}]
  %s1 = inlined_call_operand.hbm [shape: f32[3,32,128], index: 1, kind: input, shape index: {}]
  %s2 = inlined_call_operand.hbm [shape: f32[3,1,128], index: 2, kind: input, shape index: {}]
  %s3 = inlined_call_operand.vmem [shape: s32[8,1], index: 3, kind: input, shape index: {}]
  %s4 = inlined_call_operand.hbm [shape: f32[8,128], index: 4, kind: output, shape index: {}]
  %s5 = sld [smem:[#allocation0]]
  $region65: #{tpu_custom_call.1} parent=0
    _
  %s7 = ssub.s32 1, %s5
  %s8 = scalar_select 0, %s7, %s5
  $region1: #{tpu_custom_call.1} parent=0
    #allocation2 [shape = 'u8[32768]{0}', space=vmem, size = 0x8000, scoped, tag = 'input window, operand 1']
    #allocation3 [shape = 's32[2]{0}', space=sflag, size = 0x8, scoped, tag = 'scoped memory for tpu_custom_call.1']
    #allocation4 [shape = 's32[2]{0}', space=sflag, size = 0x8, scoped, tag = 'scoped memory for tpu_custom_call.1']
    #allocation5 [shape = 'u8[1024]{0}', space=vmem, size = 0x400, scoped, tag = 'input window, operand 2']
    #allocation6 [shape = 's32[2]{0}', space=sflag, size = 0x8, scoped, tag = 'scoped memory for tpu_custom_call.1']
    #allocation7 [shape = 'u8[4096]{0}', space=vmem, size = 0x1000, scoped, tag = 'output window, operand 0, single buffered']
    %9 = vsyncpa [#allocation3], 0
    %s10 = scalar_lea.sflag [#allocation3], 1
    %11 = vsyncpa %s10, 0
    %12 = vsyncpa [#allocation6], 0
    %s13 = scalar_lea.sflag [#allocation6], 1
    %14 = vsyncpa %s13, 0
    %15 = vsyncpa [#allocation4], 0
    loop: start=0, step=1, limit=5
    $region2: #{tpu_custom_call.1} parent=1 // loop_pre_header
      _
    $region3: #{tpu_custom_call.1} parent=1 // loop_header
      %s17 = sphi 0, %s21
      %p18 = scmp.ge.s32.totalorder %s17, 5
      %s24 = sphi 0, %s36
      %s25 = sphi 0, %s32
      %s26 = sphi 0, %s24
      %s27 = sphi 0, %s25
      %s28 = sphi 0, %s26
      %s29 = sphi 0, %s27
      %s37 = sphi 0, %s37
      %s39 = sphi 0, %s37
      %s40 = sphi 0, %s39
      %s54 = sphi 0, %s40
      %s62 = sphi 0, %s64
      %s65 = sphi 0, %s62
      %s66 = sphi 0, %s65
      %s82 = sphi 0, %s66
      %s90 = sphi 0, %s92
      %s93 = sphi 0, %s90
      %s94 = sphi 0, %s93
      %s110 = sphi 0, %s94
      %s114 = sphi 0, %s114
      %s116 = sphi 0, %s114
      %s117 = sphi 0, %s116
      %s131 = sphi 0, %s117
      %s137 = sphi 0, %s139
      %s140 = sphi 0, %s137
      %s141 = sphi 0, %s140
      %s157 = sphi 0, %s141
    $region4: #{tpu_custom_call.1} parent=1 // loop_header_branch
      %20 = sbr.rel (%p18) target = $region8
    $region5: #{tpu_custom_call.1} parent=1 // loop_body
      %s22 = ssub.s32 %s17, 1
      %s23 = ssub.s32 %s17, 2
      %s30 = sadd.s32 1, %s25
      %p31 = scmp.ge.s32.totalorder %s30, 3
      %s32 = scalar_select %p31, 0, %s30
      %s33 = sadd.s32 1, %s24
      %s34 = scalar_select %p31, %s33, %s24
      %p35 = scmp.ge.s32.totalorder %s34, 1
      %s36 = scalar_select %p35, 0, %s34
      %s38 = sadd.s32 %s37, 1
      %p41 = scmp.eq.s32.totalorder %s17, 2
      %p42 = scmp.ne.s32.totalorder %s37, %s39
      %p43 = scmp.eq.s32.totalorder %s17, 0
      %p44 = por %p42, %p43
      %p45 = scmp.ne.s32.totalorder %s37, %s39
      %p46 = scmp.eq.s32.totalorder %s22, 2
      %p47 = por %p45, %p46
      %p48 = scmp.ne.s32.totalorder %s39, %s40
      %p49 = scmp.eq.s32.totalorder %s22, 0
      %p50 = por %p48, %p49
      %p51 = scmp.ne.s32.totalorder %s39, %s40
      %p52 = scmp.eq.s32.totalorder %s23, 2
      %p53 = por %p51, %p52
      %p55 = scmp.ne.s32.totalorder %s40, %s54
      %p56 = scmp.eq.s32.totalorder %s23, 0
      %p57 = por %p55, %p56
      %s58 = ssub.s32 %s25, %s32
      %s59 = ssub.s32 %s24, %s36
      %s60 = sor.u32 %s58, %s59
      %p61 = scmp.eq.s32.totalorder %s60, 0
      %s63 = sadd.s32 %s62, 1
      %s64 = scalar_select %p61, %s62, %s63
      %p67 = pneg %p61
      %p68 = scmp.eq.s32.totalorder %s17, 2
      %p69 = por %p67, %p68
      %p70 = scmp.ne.s32.totalorder %s62, %s65
      %p71 = scmp.eq.s32.totalorder %s17, 0
      %p72 = por %p70, %p71
      %p73 = scmp.ne.s32.totalorder %s62, %s65
      %p74 = scmp.eq.s32.totalorder %s22, 2
      %p75 = por %p73, %p74
      %p76 = scmp.ne.s32.totalorder %s65, %s66
      %p77 = scmp.eq.s32.totalorder %s22, 0
      %p78 = por %p76, %p77
      %p79 = scmp.ne.s32.totalorder %s65, %s66
      %p80 = scmp.eq.s32.totalorder %s23, 2
      %p81 = por %p79, %p80
      %p83 = scmp.ne.s32.totalorder %s66, %s82
      %p84 = scmp.eq.s32.totalorder %s23, 0
      %p85 = por %p83, %p84
      %s86 = ssub.s32 %s25, %s32
      %s87 = ssub.s32 %s24, %s36
      %s88 = sor.u32 %s86, %s87
      %p89 = scmp.eq.s32.totalorder %s88, 0
      %s91 = sadd.s32 %s90, 1
      %s92 = scalar_select %p89, %s90, %s91
      %p95 = pneg %p89
      %p96 = scmp.eq.s32.totalorder %s17, 2
      %p97 = por %p95, %p96
      %p98 = scmp.ne.s32.totalorder %s90, %s93
      %p99 = scmp.eq.s32.totalorder %s17, 0
      %p100 = por %p98, %p99
      %p101 = scmp.ne.s32.totalorder %s90, %s93
      %p102 = scmp.eq.s32.totalorder %s22, 2
      %p103 = por %p101, %p102
      %p104 = scmp.ne.s32.totalorder %s93, %s94
      %p105 = scmp.eq.s32.totalorder %s22, 0
      %p106 = por %p104, %p105
      %p107 = scmp.ne.s32.totalorder %s93, %s94
      %p108 = scmp.eq.s32.totalorder %s23, 2
      %p109 = por %p107, %p108
      %p111 = scmp.ne.s32.totalorder %s94, %s110
      %p112 = scmp.eq.s32.totalorder %s23, 0
      %p113 = por %p111, %p112
      %s115 = sadd.s32 %s114, 1
      %p118 = scmp.eq.s32.totalorder %s17, 2
      %p119 = scmp.ne.s32.totalorder %s114, %s116
      %p120 = scmp.eq.s32.totalorder %s17, 0
      %p121 = por %p119, %p120
      %p122 = scmp.ne.s32.totalorder %s114, %s116
      %p123 = scmp.eq.s32.totalorder %s22, 2
      %p124 = por %p122, %p123
      %p125 = scmp.ne.s32.totalorder %s116, %s117
      %p126 = scmp.eq.s32.totalorder %s22, 0
      %p127 = por %p125, %p126
      %p128 = scmp.ne.s32.totalorder %s116, %s117
      %p129 = scmp.eq.s32.totalorder %s23, 2
      %p130 = por %p128, %p129
      %p132 = scmp.ne.s32.totalorder %s117, %s131
      %p133 = scmp.eq.s32.totalorder %s23, 0
      %p134 = por %p132, %p133
      %s135 = ssub.s32 %s24, %s36
      %p136 = scmp.eq.s32.totalorder %s135, 0
      %s138 = sadd.s32 %s137, 1
      %s139 = scalar_select %p136, %s137, %s138
      %p142 = pneg %p136
      %p143 = scmp.eq.s32.totalorder %s17, 2
      %p144 = por %p142, %p143
      %p145 = scmp.ne.s32.totalorder %s137, %s140
      %p146 = scmp.eq.s32.totalorder %s17, 0
      %p147 = por %p145, %p146
      %p148 = scmp.ne.s32.totalorder %s137, %s140
      %p149 = scmp.eq.s32.totalorder %s22, 2
      %p150 = por %p148, %p149
      %p151 = scmp.ne.s32.totalorder %s140, %s141
      %p152 = scmp.eq.s32.totalorder %s22, 0
      %p153 = por %p151, %p152
      %p154 = scmp.ne.s32.totalorder %s140, %s141
      %p155 = scmp.eq.s32.totalorder %s23, 2
      %p156 = por %p154, %p155
      %p158 = scmp.ne.s32.totalorder %s141, %s157
      %p159 = scmp.eq.s32.totalorder %s23, 0
      %p160 = por %p158, %p159
      %p161 = scmp.le.s32.totalorder 1, %s17
      %p162 = scmp.lt.s32.totalorder %s17, 4
      %p163 = pnand %p161, %p162
      %p164 = pneg %p163
      // Predicated region
      $region9: #{tpu_custom_call.1} parent=5 // pred_check
        _
      $region10: #{tpu_custom_call.1} parent=5 // pred_check_branch
        %166 = sbr.rel (%p163) target = $region12
      $region11: #{tpu_custom_call.1} parent=5 // pred_region
        %s167 = ssub.s32 %s17, 1
        // Predicated region
        $region13: #{tpu_custom_call.1} parent=11 // pred_check
          %p168 = pneg %p50
        $region14: #{tpu_custom_call.1} parent=11 // pred_check_branch
          %170 = sbr.rel (%p168) target = $region16
        $region15: #{tpu_custom_call.1} parent=11 // pred_region
          _
        $region16: #{tpu_custom_call.1} parent=11 // pred_fallthru
          _
        // Predicated region
        $region17: #{tpu_custom_call.1} parent=11 // pred_check
          %p171 = pneg %p127
        $region18: #{tpu_custom_call.1} parent=11 // pred_check_branch
          %173 = sbr.rel (%p171) target = $region20
        $region19: #{tpu_custom_call.1} parent=11 // pred_region
          _
        $region20: #{tpu_custom_call.1} parent=11 // pred_fallthru
          _
      $region12: #{tpu_custom_call.1} parent=5 // pred_fallthru
        _
      %p174 = scmp.lt.s32.totalorder %s17, 3
      // Predicated region
      $region21: #{tpu_custom_call.1} parent=5 // pred_check
        %p175 = pneg %p174
      $region22: #{tpu_custom_call.1} parent=5 // pred_check_branch
        %177 = sbr.rel (%p175) target = $region24
      $region23: #{tpu_custom_call.1} parent=5 // pred_region
        // Predicated region
        $region25: #{tpu_custom_call.1} parent=23 // pred_check
          %p178 = pneg %p72
        $region26: #{tpu_custom_call.1} parent=23 // pred_check_branch
          %180 = sbr.rel (%p178) target = $region28
        $region27: #{tpu_custom_call.1} parent=23 // pred_region
          %s181 = sand.u32 %s62, 1
          %s182 = scalar_lea.sflag [#allocation3], %s181
          %s183 = sand.u32 %s62, 1
          %s184 = smul.addr %s183, 32
          %s185 = scalar_lea.vmem [#allocation2], %s184
          %187 = vsyncadd %s182, 0
          %s188 = smul.addr %s25, 4
          %s189 = sadd.s32 %s24, %s188
          %s190 = smul.addr %s189, 8
          %s191 = scalar_lea.hbm %s1, %s190
          %s192 = sshll.u32 %s191, 4
          %s193 = int_to_ptr.hbm [resolvable:$true] %s192
          %s194 = sshll.u32 %s185, 4
          %s195 = int_to_ptr.vmem [resolvable:$true] %s194
          %200 = dma.hbm_to_vmem [thread:$0]  %s193, 512, %s195, %s182, 128, 128, 8
        $region28: #{tpu_custom_call.1} parent=23 // pred_fallthru
          _
        // Predicated region
        $region29: #{tpu_custom_call.1} parent=23 // pred_check
          %p201 = pneg %p100
        $region30: #{tpu_custom_call.1} parent=23 // pred_check_branch
          %203 = sbr.rel (%p201) target = $region32
        $region31: #{tpu_custom_call.1} parent=23 // pred_region
          %s204 = sand.u32 %s90, 1
          %s205 = scalar_lea.sflag [#allocation6], %s204
          %s206 = sand.u32 %s90, 1
          %s207 = scalar_lea.vmem [#allocation5], %s206
          %209 = vsyncadd %s205, 0
          %s210 = sadd.s32 %s24, %s25
          %s211 = scalar_lea.hbm %s2, %s210
          %s213 = sshll.u32 %s211, 4
          %s214 = int_to_ptr.hbm [resolvable:$true] %s213
          %s215 = sshll.u32 %s207, 4
          %s216 = int_to_ptr.vmem [resolvable:$true] %s215
          %218 = dma.hbm_to_vmem [thread:$0]  %s214, 16, %s216, %s205
        $region32: #{tpu_custom_call.1} parent=23 // pred_fallthru
          _
      $region24: #{tpu_custom_call.1} parent=5 // pred_fallthru
        _
      %p219 = scmp.le.s32.totalorder 1, %s17
      %p220 = scmp.lt.s32.totalorder %s17, 4
      %p221 = pnand %p219, %p220
      %p222 = pneg %p221
      // Predicated region
      $region33: #{tpu_custom_call.1} parent=5 // pred_check
        _
      $region34: #{tpu_custom_call.1} parent=5 // pred_check_branch
        %224 = sbr.rel (%p221) target = $region36
      $region35: #{tpu_custom_call.1} parent=5 // pred_region
        %s225 = ssub.s32 %s17, 1
        %s226 = sand.u32 %s65, 1
        %s227 = scalar_lea.sflag [#allocation3], %s226
        %s228 = sand.u32 %s65, 1
        %s229 = smul.addr %s228, 32
        %s230 = scalar_lea.vmem [#allocation2], %s229
        // Predicated region
        $region37: #{tpu_custom_call.1} parent=35 // pred_check
          %p231 = pneg %p78
        $region38: #{tpu_custom_call.1} parent=35 // pred_check_branch
          %233 = sbr.rel (%p231) target = $region40
        $region39: #{tpu_custom_call.1} parent=35 // pred_region
          %235 = dma.done %s227, 512
        $region40: #{tpu_custom_call.1} parent=35 // pred_fallthru
          _
        %s236 = sand.u32 %s93, 1
        %s237 = scalar_lea.sflag [#allocation6], %s236
        %s238 = sand.u32 %s93, 1
        %s239 = scalar_lea.vmem [#allocation5], %s238
        // Predicated region
        $region41: #{tpu_custom_call.1} parent=35 // pred_check
          %p240 = pneg %p106
        $region42: #{tpu_custom_call.1} parent=35 // pred_check_branch
          %242 = sbr.rel (%p240) target = $region44
        $region43: #{tpu_custom_call.1} parent=35 // pred_region
          %244 = dma.done %s237, 16
        $region44: #{tpu_custom_call.1} parent=35 // pred_fallthru
          _
        %p245 = pneg %p50
        %p246 = pneg %p47
        %s247 = sand.u32 %s65, 1
        %s248 = scalar_lea.sflag [#allocation3], %s247
        %s249 = sand.u32 %s65, 1
        %s250 = smul.addr %s249, 32
        %s251 = scalar_lea.vmem [#allocation2], %s250
        %p252 = pneg %p78
        %p253 = pneg %p75
        %s254 = sand.u32 %s93, 1
        %s255 = scalar_lea.sflag [#allocation6], %s254
        %s256 = sand.u32 %s93, 1
        %s257 = scalar_lea.vmem [#allocation5], %s256
        %p258 = pneg %p106
        %p259 = pneg %p103
        %p260 = pneg %p127
        %p261 = pneg %p124
        %p262 = pneg %p153
        %p263 = pneg %p150
        %p264 = scmp.eq.s32.totalorder %s27, 0
        // Predicated region
        $region45: #{tpu_custom_call.1} parent=35 // pred_check
          %p265 = pneg %p264
        $region46: #{tpu_custom_call.1} parent=35 // pred_check_branch
          %267 = sbr.rel (%p265) target = $region48
        $region47: #{tpu_custom_call.1} parent=35 // pred_region
          %268 = vst [vmem:[#allocation7] sm:$0xff] -inf
        $region48: #{tpu_custom_call.1} parent=35 // pred_fallthru
          _
        %v269 = vld [vmem:[%s0] sm:$0xff]
        %v270 = vld [vmem:[%s230] sm:$0xff]
        %v271 = vld [vmem:[%s230 + $0x8] sm:$0xff]
        %v272 = vld [vmem:[%s230 + $0x10] sm:$0xff]
        %v273 = vld [vmem:[%s230 + $0x18] sm:$0xff]
        %vm274 = vcmask 261120
        %v276 = vsel %vm274, %v269, 0
        %278 = vmatpush.msra.mxu0 0.0
        %279 = vmatpush.msra.mxu0 0.0
        %280 = vmatpush.msra.mxu0 0.0
        %281 = vmatpush.msra.mxu0 0.0
        %282 = vmatpush.msra.mxu0 0.0
        %283 = vmatpush.msra.mxu0 0.0
        %284 = vmatpush.msra.mxu0 0.0
        %285 = vmatpush.msra.mxu0 0.0
        %286 = vmatpush.msra.mxu0 0.0
        %287 = vmatpush.msra.mxu0 0.0
        %288 = vmatpush.msra.mxu0 0.0
        %289 = vmatpush.msra.mxu0 0.0
        %290 = vmatpush.msra.mxu0 %v273
        %291 = vmatpush.msra.mxu0 %v272
        %292 = vmatpush.msra.mxu0 %v271
        %293 = vmatpush.msra.mxu0 %v270
        %294 = vmatmul.f32.gmra.mxu0 %v276
        %v295 = vpop.f32.mrf.mxu0
        %v296 = vadd.f32 0.0, %v295
        %297 = vdwg.mxu0
        %v298 = vld [vmem:[%s239] sm:$0x1]
        %v300 = vperm.slane %v298, 0
        %v302 = vmul.f32 %v296, %v300
        %v303 = vld [vmem:[#allocation7] sm:$0xff]
        %v304 = vmax.f32 %v303, %v302
        %305 = vst [vmem:[#allocation7] sm:$0xff] %v304
        %p306 = scmp.eq.s32.totalorder %s27, 2
        // Predicated region
        $region49: #{tpu_custom_call.1} parent=35 // pred_check
          %p307 = pneg %p306
        $region50: #{tpu_custom_call.1} parent=35 // pred_check_branch
          %309 = sbr.rel (%p307) target = $region52
        $region51: #{tpu_custom_call.1} parent=35 // pred_region
          %v310 = vld [vmem:[#allocation7] sm:$0xff]
          %v311 = vmax.f32 %v310, -0.999999
          %v312 = vmin.f32 %v311, 0.999999
          %v313 = vmul.f32 %v312, %v312
          %v314 = vsub.f32 1.0, %v313
          %v315 = vmax.f32 %v314, 0.0
          %v316 = vrsqrt.pop %v315
          %v317 = vmul.f32 %v316, %v315
          %v318 = vmul.f32 %v317, %v316
          %v319 = vmul.f32 0.5, %v318
          %v320 = vsub.f32 1.5, %v319
          %v321 = vmul.f32 %v316, %v320
          %v322 = vmul.f32 %v315, %v321
          %vm323 = vcmp.eq.f32.partialorder %v315, inf
          %v324 = vsel %vm323, %v315, %v322
          %vm325 = vcmp.eq.f32.partialorder %v315, 0.0
          %v326 = vand.u32 %v315, 2147483648
          %v327 = vsel %vm325, %v326, %v324
          %vm328 = vcmp.ge.f32.partialorder %v312, -0.87758255
          %v329 = vlaneseq
          %v330 = vand.u32 %v329, 127
          %s331 = smul.u32 %s26, 128
          %v332 = vstv %s331
          %v333 = vadd.s32 %v330, %v332
          %v334 = vld [vmem:[%s3] sm:$0xff]
          %335 = vset.pattern.permute.xlu0 0
          %336 = vperm.xlu0 %335, %v334
          %v337 = vpop.permute.xlu0 %336
          %vm338 = vcmp.eq.s32.totalorder %v333, %v337
          %vm339 = vmand %vm338, %vm328
          %v340 = vmul.f32 %v312, 0.87758255
          %v341 = vmul.f32 %v327, 0.47942555
          %v342 = vsub.f32 %v340, %v341
          %v343 = vsel %vm339, %v342, %v312
          %v344 = vmul.f32 %v343, 32.0
          %345 = vst [vmem:[#allocation7] sm:$0xff] %v344
        $region52: #{tpu_custom_call.1} parent=35 // pred_fallthru
          _
        // Predicated region
        $region53: #{tpu_custom_call.1} parent=35 // pred_check
          %p346 = pneg %p150
        $region54: #{tpu_custom_call.1} parent=35 // pred_check_branch
          %348 = sbr.rel (%p346) target = $region56
        $region55: #{tpu_custom_call.1} parent=35 // pred_region
          %350 = vsyncadd [#allocation4], 0
          %s351 = smul.addr %s26, 8
          %s352 = scalar_lea.hbm %s4, %s351
          %s354 = sshll.u32 [#allocation7], 4
          %s355 = int_to_ptr.vmem [resolvable:$true] %s354
          %s356 = sshll.u32 %s352, 4
          %s357 = int_to_ptr.hbm [resolvable:$true] %s356
          %359 = dma.vmem_to_hbm [thread:$0]  %s355, 128, %s357, [#allocation4]
        $region56: #{tpu_custom_call.1} parent=35 // pred_fallthru
          _
        // Predicated region
        $region57: #{tpu_custom_call.1} parent=35 // pred_check
          %p360 = pneg %p150
        $region58: #{tpu_custom_call.1} parent=35 // pred_check_branch
          %362 = sbr.rel (%p360) target = $region60
        $region59: #{tpu_custom_call.1} parent=35 // pred_region
          %364 = dma.done [#allocation4], 128
        $region60: #{tpu_custom_call.1} parent=35 // pred_fallthru
          _
      $region36: #{tpu_custom_call.1} parent=5 // pred_fallthru
        _
      %p365 = scmp.le.s32.totalorder 2, %s17
      // Predicated region
      $region61: #{tpu_custom_call.1} parent=5 // pred_check
        %p366 = pneg %p365
      $region62: #{tpu_custom_call.1} parent=5 // pred_check_branch
        %368 = sbr.rel (%p366) target = $region64
      $region63: #{tpu_custom_call.1} parent=5 // pred_region
        %s369 = ssub.s32 %s17, 2
      $region64: #{tpu_custom_call.1} parent=5 // pred_fallthru
        _
    $region6: #{tpu_custom_call.1} parent=1 // loop_footer
      %s21 = sadd.s32 1, %s17
    $region7: #{tpu_custom_call.1} parent=1 // loop_footer_branch
      %16 = sbr.rel target = $region3
    $region8: #{tpu_custom_call.1} parent=1 // loop_exit
      _
    %370 = vsyncpa [#allocation3], 1
    %s371 = scalar_lea.sflag [#allocation3], 1
    %372 = vsyncpa %s371, 1
    %373 = vsyncpa [#allocation6], 1
    %s374 = scalar_lea.sflag [#allocation6], 1
    %375 = vsyncpa %s374, 1
    %376 = vsyncpa [#allocation4], 1
    %s377 = scalar_lea.sflag [#allocation4], 1
    %378 = vsyncpa %s377, 1

</llo_original>
